<compile_context>
chip_gen: v6e
topology: v6e:2x2x1
jax: 0.10.0
libtpu: 0.0.40
codegen_flags: <defaults>
</compile_context>

<pallas_src>
import functools

import numpy as np
import jax
import jax.numpy as jnp
from jax.experimental import pallas as pl
from jax.experimental.pallas import tpu as pltpu


def _round_up(x, m):
    return ((x + m - 1) // m) * m


# -----------------------------------------------------------------------------
# Fused stacked-LSTMCell kernel: one grid step == one layer.
# -----------------------------------------------------------------------------
def _stacked_lstm_kernel(x0_ref, h0_ref, c0_ref, w_ref, b_ref,
                         out_ref, hn_ref, cn_ref, xh_ref, *,
                         hidden_pad, x_width, res_first, res_rest):
    """One LSTMCell layer per grid step.

    xh_ref (VMEM scratch, f32, [B, x_width + Hp]) holds the concatenated
    [layer_input | layer_hidden] buffer; the layer input region [0:x_width]
    is chained across grid steps (layer l writes its output there for l+1).
    Weights are pre-packed so that gate g occupies lane-aligned columns
    [g*Hp : g*Hp + H] and hidden rows start at x_width.
    """
    l = pl.program_id(0)
    hp = hidden_pad
    bsz = xh_ref.shape[0]

    @pl.when(l == 0)
    def _():
        # Layer 0: load the padded external input; this also initializes every
        # unused column of the concat buffer to zero (no stale-VMEM NaNs).
        xh_ref[...] = x0_ref[...]

    # This layer's initial hidden state goes into the lane-aligned hidden slot.
    xh_ref[:, x_width:x_width + hp] = h0_ref[...]

    # Single fused MXU matmul over [x | h]: bf16 inputs, f32 accumulation.
    gates = jnp.dot(xh_ref[...].astype(jnp.bfloat16), w_ref[...],
                    preferred_element_type=jnp.float32) + b_ref[...]

    # Lane-aligned gate slices (each gate is a full 128-lane padded block).
    i_g = jax.nn.sigmoid(gates[:, 0 * hp:1 * hp])
    f_g = jax.nn.sigmoid(gates[:, 1 * hp:2 * hp])
    g_g = jnp.tanh(gates[:, 2 * hp:3 * hp])
    o_g = jax.nn.sigmoid(gates[:, 3 * hp:4 * hp])

    c = c0_ref[...]
    c_new = f_g * c + i_g * g_g
    h_new = o_g * jnp.tanh(c_new)

    hn_ref[...] = h_new.astype(hn_ref.dtype)
    cn_ref[...] = c_new.astype(cn_ref.dtype)

    # Residual add (only when layer input width == hidden width, as in PyTorch).
    x_prev = xh_ref[:, 0:hp]  # layer input; padded lanes are zero
    if res_first == res_rest:
        out = h_new + x_prev if res_first else h_new
    else:
        # Exactly one of {layer 0, layers>0} takes the residual.
        take_res = (l == 0) if res_first else (l > 0)
        mask = jnp.where(take_res, jnp.float32(1.0), jnp.float32(0.0))
        out = h_new + mask * x_prev

    out_ref[...] = out.astype(out_ref.dtype)

    # Chain this layer's output as the next layer's input (stays in VMEM).
    xh_ref[:, 0:hp] = out.astype(xh_ref.dtype)
    if x_width > hp:
        # Only possible when input_size > 128 > hidden: clear stale x0 columns.
        @pl.when(l == 0)
        def _():
            xh_ref[:, hp:x_width] = jnp.zeros((bsz, x_width - hp), xh_ref.dtype)

    # TODO(synk): nn.Dropout between layers omitted (dropout=0 / eval mode).


# -----------------------------------------------------------------------------
# Parameter init (PyTorch LSTMCell shapes) + packing into the fused layout.
# -----------------------------------------------------------------------------
def init_stacked_cell_params(key, input_size, hidden_size, num_layers,
                             dtype=jnp.float32):
    """Raw per-layer params with PyTorch LSTMCell shapes:
    W_ih:[4H, in], W_hh:[4H, H], b_ih:[4H], b_hh:[4H], uniform(-k, k), k=1/sqrt(H)."""
    params = []
    k = 1.0 / float(np.sqrt(hidden_size))
    in_sz = input_size
    for _ in range(num_layers):
        key, k1, k2, k3, k4 = jax.random.split(key, 5)
        params.append(dict(
            w_ih=jax.random.uniform(k1, (4 * hidden_size, in_sz), dtype, -k, k),
            w_hh=jax.random.uniform(k2, (4 * hidden_size, hidden_size), dtype, -k, k),
            b_ih=jax.random.uniform(k3, (4 * hidden_size,), dtype, -k, k),
            b_hh=jax.random.uniform(k4, (4 * hidden_size,), dtype, -k, k),
        ))
        in_sz = hidden_size
    return params


def pack_stacked_cell_params(params, input_size, hidden_size):
    """Pack per-layer params into the fused kernel layout.

    Weights -> [L, Kp, 4*Hp] bf16, rows [0:Din_l] = W_ih^T, rows
    [x_width : x_width+H] = W_hh^T, each gate lane-padded to Hp=128 columns.
    Biases  -> [L, 1, 4*Hp] f32 with b_ih + b_hh pre-fused.
    """
    num_layers = len(params)
    hid = hidden_size
    hp = _round_up(hid, 128)
    x_width = _round_up(max(input_size, hidden_size), 128)
    kp = x_width + hp

    w_all = np.zeros((num_layers, kp, 4 * hp), np.float32)
    b_all = np.zeros((num_layers, 1, 4 * hp), np.float32)
    for layer, p in enumerate(params):
        din = input_size if layer == 0 else hid
        w_ih_t = np.asarray(p["w_ih"], np.float32).T           # [din, 4H]
        w_hh_t = np.asarray(p["w_hh"], np.float32).T           # [H, 4H]
        b = np.asarray(p["b_ih"], np.float32) + np.asarray(p["b_hh"], np.float32)
        for g in range(4):
            w_all[layer, 0:din, g * hp:g * hp + hid] = w_ih_t[:, g * hid:(g + 1) * hid]
            w_all[layer, x_width:x_width + hid, g * hp:g * hp + hid] = \
                w_hh_t[:, g * hid:(g + 1) * hid]
            b_all[layer, 0, g * hp:g * hp + hid] = b[g * hid:(g + 1) * hid]

    return dict(
        w=jnp.asarray(w_all, jnp.bfloat16),
        b=jnp.asarray(b_all, jnp.float32),
        input_size=input_size, hidden_size=hid, hidden_pad=hp,
        x_width=x_width, k_pad=kp, num_layers=num_layers,
    )


# -----------------------------------------------------------------------------
# Forward wrapper (JAX/Pallas equivalent of StackedCell.forward).
# -----------------------------------------------------------------------------
def stacked_cell_forward(packed, inputs, hidden, *, residual=False):
    """inputs: [B, input_size]; hidden: (h0, c0) each [L, B, H].
    Returns (output [B, H], (h_next [L, B, H], c_next [L, B, H]))."""
    h0, c0 = hidden
    bsz, din = inputs.shape
    num_layers = packed["num_layers"]
    hid = packed["hidden_size"]
    hp = packed["hidden_pad"]
    x_width = packed["x_width"]
    kp = packed["k_pad"]
    bp = _round_up(bsz, 8)

    # Pad to lane/sublane-friendly shapes (zeros in padding keep the math exact).
    x0p = jnp.zeros((bp, kp), jnp.float32).at[:bsz, :din].set(
        inputs.astype(jnp.float32))
    h0p = jnp.zeros((num_layers, bp, hp), jnp.float32).at[:, :bsz, :hid].set(
        h0.astype(jnp.float32))
    c0p = jnp.zeros((num_layers, bp, hp), jnp.float32).at[:, :bsz, :hid].set(
        c0.astype(jnp.float32))

    res_first = bool(residual) and (din == hid)   # PyTorch: only if sizes match
    res_rest = bool(residual)

    kernel = functools.partial(
        _stacked_lstm_kernel, hidden_pad=hp, x_width=x_width,
        res_first=res_first, res_rest=res_rest)

    out, h_next, c_next = pl.pallas_call(
        kernel,
        out_shape=(
            jax.ShapeDtypeStruct((bp, hp), jnp.float32),               # last-layer output
            jax.ShapeDtypeStruct((num_layers, bp, hp), jnp.float32),   # h' per layer
            jax.ShapeDtypeStruct((num_layers, bp, hp), jnp.float32),   # c' per layer
        ),
        grid_spec=pltpu.PrefetchScalarGridSpec(
            num_scalar_prefetch=0,
            grid=(num_layers,),
            in_specs=[
                pl.BlockSpec((bp, kp), lambda l: (0, 0)),                 # padded x0
                pl.BlockSpec((None, bp, hp), lambda l: (l, 0, 0)),        # h0[l]
                pl.BlockSpec((None, bp, hp), lambda l: (l, 0, 0)),        # c0[l]
                pl.BlockSpec((None, kp, 4 * hp), lambda l: (l, 0, 0)),    # W[l] (bf16)
                pl.BlockSpec((None, 1, 4 * hp), lambda l: (l, 0, 0)),     # b[l]
            ],
            out_specs=(
                pl.BlockSpec((bp, hp), lambda l: (0, 0)),                 # resident output
                pl.BlockSpec((None, bp, hp), lambda l: (l, 0, 0)),
                pl.BlockSpec((None, bp, hp), lambda l: (l, 0, 0)),
            ),
            scratch_shapes=[pltpu.VMEM((bp, kp), jnp.float32)],           # [x | h] buffer
        ),
        compiler_params=pltpu.CompilerParams(
            # layer axis carries a dependency through the scratch buffer
            dimension_semantics=("arbitrary",)),
    )(x0p, h0p, c0p, packed["w"], packed["b"])

    return out[:bsz, :hid], (h_next[:, :bsz, :hid], c_next[:, :bsz, :hid])


# -----------------------------------------------------------------------------
# Pure-JAX f32 reference (PyTorch LSTMCell math) for correctness checking.
# -----------------------------------------------------------------------------
def _reference_forward(params, inputs, hidden, *, residual=False):
    h0, c0 = hidden
    x = inputs.astype(jnp.float32)
    next_h, next_c = [], []
    for i, p in enumerate(params):
        hid = p["w_hh"].shape[1]
        gates = (x @ p["w_ih"].T + p["b_ih"] + h0[i] @ p["w_hh"].T + p["b_hh"])
        i_g = jax.nn.sigmoid(gates[:, 0 * hid:1 * hid])
        f_g = jax.nn.sigmoid(gates[:, 1 * hid:2 * hid])
        g_g = jnp.tanh(gates[:, 2 * hid:3 * hid])
        o_g = jax.nn.sigmoid(gates[:, 3 * hid:4 * hid])
        c_new = f_g * c0[i] + i_g * g_g
        h_new = o_g * jnp.tanh(c_new)
        x = h_new + x if (residual and x.shape[-1] == hid) else h_new
        next_h.append(h_new)
        next_c.append(c_new)
    return x, (jnp.stack(next_h), jnp.stack(next_c))


if __name__ == "__main__":
    key = jax.random.PRNGKey(0)

    def run_case(input_size, hidden_size, num_layers, batch, residual, key):
        key, kx, kh, kc, kp = jax.random.split(key, 5)
        x = jax.random.normal(kx, (batch, input_size), jnp.float32)
        h0 = jax.random.normal(kh, (num_layers, batch, hidden_size), jnp.float32)
        c0 = jax.random.normal(kc, (num_layers, batch, hidden_size), jnp.float32)
        params = init_stacked_cell_params(kp, input_size, hidden_size, num_layers)
        packed = pack_stacked_cell_params(params, input_size, hidden_size)

        out, (hn, cn) = stacked_cell_forward(packed, x, (h0, c0),
                                             residual=residual)
        jax.block_until_ready((out, hn, cn))

        out_r, (hn_r, cn_r) = _reference_forward(params, x, (h0, c0),
                                                 residual=residual)
        # bf16 matmul inputs -> loosened tolerance vs. the pure-f32 reference.
        tol = dict(atol=3e-2, rtol=3e-2)
        assert jnp.allclose(out, out_r, **tol)
        assert jnp.allclose(hn, hn_r, **tol)
        assert jnp.allclose(cn, cn_r, **tol)
        return key

    # Case 1: input_size == hidden_size -> residual applies on every layer.
    key = run_case(input_size=32, hidden_size=32, num_layers=3, batch=8,
                   residual=True, key=key)
    # Case 2: input_size != hidden_size -> residual skipped on layer 0 only.
    key = run_case(input_size=48, hidden_size=32, num_layers=2, batch=8,
                   residual=True, key=key)

    print("KERNEL_OK")
</pallas_src>

<mosaic_0001>
module attributes {stable_mosaic.version = 11 : i64} {
  func.func @_stacked_lstm_kernel(%arg0: i32, %arg1: memref<8x256xf32, #tpu.memory_space<vmem>>, %arg2: memref<1x8x128xf32, #tpu.memory_space<vmem>>, %arg3: memref<1x8x128xf32, #tpu.memory_space<vmem>>, %arg4: memref<1x256x512xbf16, #tpu.memory_space<vmem>>, %arg5: memref<1x1x512xf32, #tpu.memory_space<vmem>>, %arg6: memref<8x128xf32, #tpu.memory_space<vmem>>, %arg7: memref<1x8x128xf32, #tpu.memory_space<vmem>>, %arg8: memref<1x8x128xf32, #tpu.memory_space<vmem>>, %arg9: memref<8x256xf32, #tpu.memory_space<vmem>>) attributes {dimension_semantics = [#tpu.dimension_semantics<arbitrary>], iteration_bounds = array<i64: 3>, scalar_prefetch = 0 : i64, scratch_operands = 1 : i64, tpu.core_type = #tpu.core_type<tc>, window_params = [{pipeline_mode = #tpu.pipeline_mode<synchronous>, transform_indices = @transform_0, window_bounds = array<i64: 8, 256>}, {transform_indices = @transform_1, window_bounds = array<i64: 1, 8, 128>}, {transform_indices = @transform_2, window_bounds = array<i64: 1, 8, 128>}, {transform_indices = @transform_3, window_bounds = array<i64: 1, 256, 512>}, {transform_indices = @transform_4, window_bounds = array<i64: 1, 1, 512>}, {pipeline_mode = #tpu.pipeline_mode<synchronous>, transform_indices = @transform_5, window_bounds = array<i64: 8, 128>}, {transform_indices = @transform_6, window_bounds = array<i64: 1, 8, 128>}, {transform_indices = @transform_7, window_bounds = array<i64: 1, 8, 128>}]} {
    %c0_i32 = arith.constant 0 : i32
    %0 = arith.cmpi eq, %arg0, %c0_i32 : i32
    %1 = arith.extui %0 : i1 to i32
    %c0_i32_0 = arith.constant 0 : i32
    %2 = arith.cmpi ne, %1, %c0_i32_0 : i32
    scf.if %2 {
      %c0_30 = arith.constant 0 : index
      %c0_31 = arith.constant 0 : index
      %52 = vector.load %arg1[%c0_30, %c0_31] : memref<8x256xf32, #tpu.memory_space<vmem>>, vector<8x256xf32>
      %c0_32 = arith.constant 0 : index
      %c0_33 = arith.constant 0 : index
      %53 = vector.load %arg9[%c0_32, %c0_33] : memref<8x256xf32, #tpu.memory_space<vmem>>, vector<8x256xf32>
      tpu.vector_store %arg9[%c0_32, %c0_33], %52 {strides = array<i32>} : memref<8x256xf32, #tpu.memory_space<vmem>>, vector<8x256xf32>,
    } else {
    }
    %c0 = arith.constant 0 : index
    %c0_1 = arith.constant 0 : index
    %c0_2 = arith.constant 0 : index
    %3 = vector.load %arg2[%c0, %c0_1, %c0_2] : memref<1x8x128xf32, #tpu.memory_space<vmem>>, vector<1x8x128xf32>
    %4 = vector.shape_cast %3 : vector<1x8x128xf32> to vector<8x128xf32>
    %c0_3 = arith.constant 0 : index
    %c128 = arith.constant 128 : index
    %5 = vector.load %arg9[%c0_3, %c128] : memref<8x256xf32, #tpu.memory_space<vmem>>, vector<8x128xf32>
    tpu.vector_store %arg9[%c0_3, %c128], %4 {strides = array<i32>} : memref<8x256xf32, #tpu.memory_space<vmem>>, vector<8x128xf32>,
    %c0_4 = arith.constant 0 : index
    %c0_5 = arith.constant 0 : index
    %6 = vector.load %arg9[%c0_4, %c0_5] : memref<8x256xf32, #tpu.memory_space<vmem>>, vector<8x256xf32>
    %7 = arith.truncf %6 : vector<8x256xf32> to vector<8x256xbf16>
    %c0_6 = arith.constant 0 : index
    %c0_7 = arith.constant 0 : index
    %c0_8 = arith.constant 0 : index
    %8 = vector.load %arg4[%c0_6, %c0_7, %c0_8] : memref<1x256x512xbf16, #tpu.memory_space<vmem>>, vector<1x256x512xbf16>
    %9 = vector.shape_cast %8 : vector<1x256x512xbf16> to vector<256x512xbf16>
    %cst = arith.constant dense<0.000000e+00> : vector<8x512xf32>
    %10 = tpu.matmul %7, %9, %cst {dimension_numbers = #tpu.dot_dimension_numbers<[1], [0], [0], [1], [0, 0, 1, 1], [], []>} : vector<8x256xbf16>, vector<256x512xbf16>, vector<8x512xf32> -> vector<8x512xf32>
    %c0_9 = arith.constant 0 : index
    %c0_10 = arith.constant 0 : index
    %c0_11 = arith.constant 0 : index
    %11 = vector.load %arg5[%c0_9, %c0_10, %c0_11] : memref<1x1x512xf32, #tpu.memory_space<vmem>>, vector<1x1x512xf32>
    %12 = vector.shape_cast %11 : vector<1x1x512xf32> to vector<1x512xf32>
    %13 = vector.broadcast %12 : vector<1x512xf32> to vector<8x512xf32>
    %14 = arith.addf %10, %13 : vector<8x512xf32>
    %15 = vector.extract_strided_slice %14 {offsets = [0, 0], sizes = [8, 128], strides = [1, 1]} : vector<8x512xf32> to vector<8x128xf32>
    %16 = arith.negf %15 : vector<8x128xf32>
    %17 = math.exp %16 : vector<8x128xf32>
    %cst_12 = arith.constant 1.000000e+00 : f32
    %18 = vector.broadcast %cst_12 : f32 to vector<8x128xf32>
    %19 = arith.addf %18, %17 : vector<8x128xf32>
    %20 = arith.divf %18, %19 : vector<8x128xf32>
    %21 = vector.extract_strided_slice %14 {offsets = [0, 128], sizes = [8, 128], strides = [1, 1]} : vector<8x512xf32> to vector<8x128xf32>
    %22 = arith.negf %21 : vector<8x128xf32>
    %23 = math.exp %22 : vector<8x128xf32>
    %cst_13 = arith.constant 1.000000e+00 : f32
    %24 = vector.broadcast %cst_13 : f32 to vector<8x128xf32>
    %25 = arith.addf %24, %23 : vector<8x128xf32>
    %26 = arith.divf %24, %25 : vector<8x128xf32>
    %27 = vector.extract_strided_slice %14 {offsets = [0, 256], sizes = [8, 128], strides = [1, 1]} : vector<8x512xf32> to vector<8x128xf32>
    %28 = math.tanh %27 : vector<8x128xf32>
    %29 = vector.extract_strided_slice %14 {offsets = [0, 384], sizes = [8, 128], strides = [1, 1]} : vector<8x512xf32> to vector<8x128xf32>
    %30 = arith.negf %29 : vector<8x128xf32>
    %31 = math.exp %30 : vector<8x128xf32>
    %cst_14 = arith.constant 1.000000e+00 : f32
    %32 = vector.broadcast %cst_14 : f32 to vector<8x128xf32>
    %33 = arith.addf %32, %31 : vector<8x128xf32>
    %34 = arith.divf %32, %33 : vector<8x128xf32>
    %c0_15 = arith.constant 0 : index
    %c0_16 = arith.constant 0 : index
    %c0_17 = arith.constant 0 : index
    %35 = vector.load %arg3[%c0_15, %c0_16, %c0_17] : memref<1x8x128xf32, #tpu.memory_space<vmem>>, vector<1x8x128xf32>
    %36 = vector.shape_cast %35 : vector<1x8x128xf32> to vector<8x128xf32>
    %37 = arith.mulf %26, %36 : vector<8x128xf32>
    %38 = arith.mulf %20, %28 : vector<8x128xf32>
    %39 = arith.addf %37, %38 : vector<8x128xf32>
    %40 = math.tanh %39 : vector<8x128xf32>
    %41 = arith.mulf %34, %40 : vector<8x128xf32>
    %c0_18 = arith.constant 0 : index
    %c0_19 = arith.constant 0 : index
    %c0_20 = arith.constant 0 : index
    %42 = vector.load %arg7[%c0_18, %c0_19, %c0_20] : memref<1x8x128xf32, #tpu.memory_space<vmem>>, vector<1x8x128xf32>
    %43 = vector.shape_cast %42 : vector<1x8x128xf32> to vector<8x128xf32>
    %44 = vector.shape_cast %41 : vector<8x128xf32> to vector<1x8x128xf32>
    tpu.vector_store %arg7[%c0_18, %c0_19, %c0_20], %44 {strides = array<i32>} : memref<1x8x128xf32, #tpu.memory_space<vmem>>, vector<1x8x128xf32>,
    %c0_21 = arith.constant 0 : index
    %c0_22 = arith.constant 0 : index
    %c0_23 = arith.constant 0 : index
    %45 = vector.load %arg8[%c0_21, %c0_22, %c0_23] : memref<1x8x128xf32, #tpu.memory_space<vmem>>, vector<1x8x128xf32>
    %46 = vector.shape_cast %45 : vector<1x8x128xf32> to vector<8x128xf32>
    %47 = vector.shape_cast %39 : vector<8x128xf32> to vector<1x8x128xf32>
    tpu.vector_store %arg8[%c0_21, %c0_22, %c0_23], %47 {strides = array<i32>} : memref<1x8x128xf32, #tpu.memory_space<vmem>>, vector<1x8x128xf32>,
    %c0_24 = arith.constant 0 : index
    %c0_25 = arith.constant 0 : index
    %48 = vector.load %arg9[%c0_24, %c0_25] : memref<8x256xf32, #tpu.memory_space<vmem>>, vector<8x128xf32>
    %49 = arith.addf %41, %48 : vector<8x128xf32>
    %c0_26 = arith.constant 0 : index
    %c0_27 = arith.constant 0 : index
    %50 = vector.load %arg6[%c0_26, %c0_27] : memref<8x128xf32, #tpu.memory_space<vmem>>, vector<8x128xf32>
    tpu.vector_store %arg6[%c0_26, %c0_27], %49 {strides = array<i32>} : memref<8x128xf32, #tpu.memory_space<vmem>>, vector<8x128xf32>,
    %c0_28 = arith.constant 0 : index
    %c0_29 = arith.constant 0 : index
    %51 = vector.load %arg9[%c0_28, %c0_29] : memref<8x256xf32, #tpu.memory_space<vmem>>, vector<8x128xf32>
    tpu.vector_store %arg9[%c0_28, %c0_29], %49 {strides = array<i32>} : memref<8x256xf32, #tpu.memory_space<vmem>>, vector<8x128xf32>,
    return
  }
  func.func @transform_0(%arg0: i32) -> (i32, i32) {
    %c0_i32 = arith.constant 0 : i32
    %c0_i32_0 = arith.constant 0 : i32
    %c0_i32_1 = arith.constant 0 : i32
    return %c0_i32, %c0_i32_0 : i32, i32
  }
  func.func @transform_1(%arg0: i32) -> (i32, i32, i32) {
    %c0_i32 = arith.constant 0 : i32
    %c0_i32_0 = arith.constant 0 : i32
    %c0_i32_1 = arith.constant 0 : i32
    return %arg0, %c0_i32, %c0_i32_0 : i32, i32, i32
  }
  func.func @transform_2(%arg0: i32) -> (i32, i32, i32) {
    %c0_i32 = arith.constant 0 : i32
    %c0_i32_0 = arith.constant 0 : i32
    %c0_i32_1 = arith.constant 0 : i32
    return %arg0, %c0_i32, %c0_i32_0 : i32, i32, i32
  }
  func.func @transform_3(%arg0: i32) -> (i32, i32, i32) {
    %c0_i32 = arith.constant 0 : i32
    %c0_i32_0 = arith.constant 0 : i32
    %c0_i32_1 = arith.constant 0 : i32
    return %arg0, %c0_i32, %c0_i32_0 : i32, i32, i32
  }
  func.func @transform_4(%arg0: i32) -> (i32, i32, i32) {
    %c0_i32 = arith.constant 0 : i32
    %c0_i32_0 = arith.constant 0 : i32
    %c0_i32_1 = arith.constant 0 : i32
    return %arg0, %c0_i32, %c0_i32_0 : i32, i32, i32
  }
  func.func @transform_5(%arg0: i32) -> (i32, i32) {
    %c0_i32 = arith.constant 0 : i32
    %c0_i32_0 = arith.constant 0 : i32
    %c0_i32_1 = arith.constant 0 : i32
    return %c0_i32, %c0_i32_0 : i32, i32
  }
  func.func @transform_6(%arg0: i32) -> (i32, i32, i32) {
    %c0_i32 = arith.constant 0 : i32
    %c0_i32_0 = arith.constant 0 : i32
    %c0_i32_1 = arith.constant 0 : i32
    return %arg0, %c0_i32, %c0_i32_0 : i32, i32, i32
  }
  func.func @transform_7(%arg0: i32) -> (i32, i32, i32) {
    %c0_i32 = arith.constant 0 : i32
    %c0_i32_0 = arith.constant 0 : i32
    %c0_i32_1 = arith.constant 0 : i32
    return %arg0, %c0_i32, %c0_i32_0 : i32, i32, i32
  }
}

</mosaic_0001>

<llo_original>
// kernel: tpu_custom_call.1
$region0: #{tpu_custom_call.1}
  #allocation0 [shape = 'u32[]', space=smem, size = 0x4, offset = 0x4, fixed_abs, tag = 'smem constant byte address 0x4 - core index']
  #allocation1 [shape = 'u32[144,128]{1,0:T(1,128)}', space=vmem, size = 0x12000, scoped, tag = 'internal scratch']
  #allocation2 [shape = 'f32[8,256]{1,0:T(8,128)}', space=vmem, size = 0x2000, scoped, tag = 'scratch operand']
  %s0 = inlined_call_operand.hbm [shape: f32[8,256], index: 0, kind: input, shape index: {}]
  %s1 = inlined_call_operand.hbm [shape: f32[3,8,128], index: 1, kind: input, shape index: {}]
  %s2 = inlined_call_operand.hbm [shape: f32[3,8,128], index: 2, kind: input, shape index: {}]
  %s3 = inlined_call_operand.hbm [shape: bf16[3,256,512], index: 3, kind: input, shape index: {}]
  %s4 = inlined_call_operand.hbm [shape: f32[3,1,512], index: 4, kind: input, shape index: {}]
  %s5 = inlined_call_operand.hbm [shape: f32[8,128], index: 5, kind: output, shape index: {0}]
  %s6 = inlined_call_operand.hbm [shape: f32[3,8,128], index: 6, kind: output, shape index: {1}]
  %s7 = inlined_call_operand.hbm [shape: f32[3,8,128], index: 7, kind: output, shape index: {2}]
  %8 = xla_tuple %s5, %s6, %s7
  %s9 = sld [smem:[#allocation0]]
  $region93: #{tpu_custom_call.1} parent=0
    _
  %s11 = ssub.s32 1, %s9
  %s12 = scalar_select 0, %s11, %s9
  $region1: #{tpu_custom_call.1} parent=0
    #allocation3 [shape = 'u8[8192]{0}', space=vmem, size = 0x2000, scoped, tag = 'input window, operand 0, single buffered']
    #allocation4 [shape = 's32[2]{0}', space=sflag, size = 0x8, scoped, tag = 'scoped memory for tpu_custom_call.1']
    #allocation5 [shape = 's32[2]{0}', space=sflag, size = 0x8, scoped, tag = 'scoped memory for tpu_custom_call.1']
    #allocation6 [shape = 'u8[8192]{0}', space=vmem, size = 0x2000, scoped, tag = 'input window, operand 1']
    #allocation7 [shape = 's32[2]{0}', space=sflag, size = 0x8, scoped, tag = 'scoped memory for tpu_custom_call.1']
    #allocation8 [shape = 'u8[8192]{0}', space=vmem, size = 0x2000, scoped, tag = 'input window, operand 2']
    #allocation9 [shape = 'u8[524288]{0}', space=vmem, size = 0x80000, scoped, tag = 'input window, operand 3']
    #allocation10 [shape = 's32[2]{0}', space=sflag, size = 0x8, scoped, tag = 'scoped memory for tpu_custom_call.1']
    #allocation11 [shape = 'u8[4096]{0}', space=vmem, size = 0x1000, scoped, tag = 'input window, operand 4']
    #allocation12 [shape = 'u8[4096]{0}', space=vmem, size = 0x1000, scoped, tag = 'output window, operand 0, single buffered']
    #allocation13 [shape = 'u8[8192]{0}', space=vmem, size = 0x2000, scoped, tag = 'output window, operand 1']
    #allocation14 [shape = 's32[2]{0}', space=sflag, size = 0x8, scoped, tag = 'scoped memory for tpu_custom_call.1']
    #allocation15 [shape = 'u8[8192]{0}', space=vmem, size = 0x2000, scoped, tag = 'output window, operand 2']
    %13 = vsyncpa [#allocation4], 0
    %14 = vsyncpa [#allocation7], 0
    %s15 = scalar_lea.sflag [#allocation7], 1
    %16 = vsyncpa %s15, 0
    %17 = vsyncpa [#allocation10], 0
    %s18 = scalar_lea.sflag [#allocation10], 1
    %19 = vsyncpa %s18, 0
    %20 = vsyncpa [#allocation5], 0
    %21 = vsyncpa [#allocation14], 0
    %s22 = scalar_lea.sflag [#allocation14], 1
    %23 = vsyncpa %s22, 0
    loop: start=0, step=1, limit=5
    $region2: #{tpu_custom_call.1} parent=1 // loop_pre_header
      _
    $region3: #{tpu_custom_call.1} parent=1 // loop_header
      %s25 = sphi 0, %s29
      %p26 = scmp.ge.s32.totalorder %s25, 5
      %s33 = sphi 0, %s33
      %s35 = sphi 0, %s33
      %s36 = sphi 0, %s35
      %s50 = sphi 0, %s36
      %s56 = sphi 0, %s58
      %s59 = sphi 0, %s56
      %s60 = sphi 0, %s59
      %s76 = sphi 0, %s60
      %s82 = sphi 0, %s84
      %s85 = sphi 0, %s82
      %s86 = sphi 0, %s85
      %s102 = sphi 0, %s86
      %s108 = sphi 0, %s110
      %s111 = sphi 0, %s108
      %s112 = sphi 0, %s111
      %s128 = sphi 0, %s112
      %s134 = sphi 0, %s136
      %s137 = sphi 0, %s134
      %s138 = sphi 0, %s137
      %s154 = sphi 0, %s138
      %s158 = sphi 0, %s158
      %s160 = sphi 0, %s158
      %s161 = sphi 0, %s160
      %s175 = sphi 0, %s161
      %s181 = sphi 0, %s183
      %s184 = sphi 0, %s181
      %s185 = sphi 0, %s184
      %s201 = sphi 0, %s185
      %s207 = sphi 0, %s209
      %s210 = sphi 0, %s207
      %s211 = sphi 0, %s210
      %s227 = sphi 0, %s211
    $region4: #{tpu_custom_call.1} parent=1 // loop_header_branch
      %28 = sbr.rel (%p26) target = $region8
    $region5: #{tpu_custom_call.1} parent=1 // loop_body
      %s30 = ssub.s32 %s25, 1
      %s31 = ssub.s32 %s25, 2
      %s32 = sadd.s32 %s25, 1
      %s34 = sadd.s32 %s33, 1
      %p37 = scmp.eq.s32.totalorder %s25, 2
      %p38 = scmp.ne.s32.totalorder %s33, %s35
      %p39 = scmp.eq.s32.totalorder %s25, 0
      %p40 = por %p38, %p39
      %p41 = scmp.ne.s32.totalorder %s33, %s35
      %p42 = scmp.eq.s32.totalorder %s30, 2
      %p43 = por %p41, %p42
      %p44 = scmp.ne.s32.totalorder %s35, %s36
      %p45 = scmp.eq.s32.totalorder %s30, 0
      %p46 = por %p44, %p45
      %p47 = scmp.ne.s32.totalorder %s35, %s36
      %p48 = scmp.eq.s32.totalorder %s31, 2
      %p49 = por %p47, %p48
      %p51 = scmp.ne.s32.totalorder %s36, %s50
      %p52 = scmp.eq.s32.totalorder %s31, 0
      %p53 = por %p51, %p52
      %s54 = ssub.s32 %s25, %s32
      %p55 = scmp.eq.s32.totalorder %s54, 0
      %s57 = sadd.s32 %s56, 1
      %s58 = scalar_select %p55, %s56, %s57
      %p61 = pneg %p55
      %p62 = scmp.eq.s32.totalorder %s25, 2
      %p63 = por %p61, %p62
      %p64 = scmp.ne.s32.totalorder %s56, %s59
      %p65 = scmp.eq.s32.totalorder %s25, 0
      %p66 = por %p64, %p65
      %p67 = scmp.ne.s32.totalorder %s56, %s59
      %p68 = scmp.eq.s32.totalorder %s30, 2
      %p69 = por %p67, %p68
      %p70 = scmp.ne.s32.totalorder %s59, %s60
      %p71 = scmp.eq.s32.totalorder %s30, 0
      %p72 = por %p70, %p71
      %p73 = scmp.ne.s32.totalorder %s59, %s60
      %p74 = scmp.eq.s32.totalorder %s31, 2
      %p75 = por %p73, %p74
      %p77 = scmp.ne.s32.totalorder %s60, %s76
      %p78 = scmp.eq.s32.totalorder %s31, 0
      %p79 = por %p77, %p78
      %s80 = ssub.s32 %s25, %s32
      %p81 = scmp.eq.s32.totalorder %s80, 0
      %s83 = sadd.s32 %s82, 1
      %s84 = scalar_select %p81, %s82, %s83
      %p87 = pneg %p81
      %p88 = scmp.eq.s32.totalorder %s25, 2
      %p89 = por %p87, %p88
      %p90 = scmp.ne.s32.totalorder %s82, %s85
      %p91 = scmp.eq.s32.totalorder %s25, 0
      %p92 = por %p90, %p91
      %p93 = scmp.ne.s32.totalorder %s82, %s85
      %p94 = scmp.eq.s32.totalorder %s30, 2
      %p95 = por %p93, %p94
      %p96 = scmp.ne.s32.totalorder %s85, %s86
      %p97 = scmp.eq.s32.totalorder %s30, 0
      %p98 = por %p96, %p97
      %p99 = scmp.ne.s32.totalorder %s85, %s86
      %p100 = scmp.eq.s32.totalorder %s31, 2
      %p101 = por %p99, %p100
      %p103 = scmp.ne.s32.totalorder %s86, %s102
      %p104 = scmp.eq.s32.totalorder %s31, 0
      %p105 = por %p103, %p104
      %s106 = ssub.s32 %s25, %s32
      %p107 = scmp.eq.s32.totalorder %s106, 0
      %s109 = sadd.s32 %s108, 1
      %s110 = scalar_select %p107, %s108, %s109
      %p113 = pneg %p107
      %p114 = scmp.eq.s32.totalorder %s25, 2
      %p115 = por %p113, %p114
      %p116 = scmp.ne.s32.totalorder %s108, %s111
      %p117 = scmp.eq.s32.totalorder %s25, 0
      %p118 = por %p116, %p117
      %p119 = scmp.ne.s32.totalorder %s108, %s111
      %p120 = scmp.eq.s32.totalorder %s30, 2
      %p121 = por %p119, %p120
      %p122 = scmp.ne.s32.totalorder %s111, %s112
      %p123 = scmp.eq.s32.totalorder %s30, 0
      %p124 = por %p122, %p123
      %p125 = scmp.ne.s32.totalorder %s111, %s112
      %p126 = scmp.eq.s32.totalorder %s31, 2
      %p127 = por %p125, %p126
      %p129 = scmp.ne.s32.totalorder %s112, %s128
      %p130 = scmp.eq.s32.totalorder %s31, 0
      %p131 = por %p129, %p130
      %s132 = ssub.s32 %s25, %s32
      %p133 = scmp.eq.s32.totalorder %s132, 0
      %s135 = sadd.s32 %s134, 1
      %s136 = scalar_select %p133, %s134, %s135
      %p139 = pneg %p133
      %p140 = scmp.eq.s32.totalorder %s25, 2
      %p141 = por %p139, %p140
      %p142 = scmp.ne.s32.totalorder %s134, %s137
      %p143 = scmp.eq.s32.totalorder %s25, 0
      %p144 = por %p142, %p143
      %p145 = scmp.ne.s32.totalorder %s134, %s137
      %p146 = scmp.eq.s32.totalorder %s30, 2
      %p147 = por %p145, %p146
      %p148 = scmp.ne.s32.totalorder %s137, %s138
      %p149 = scmp.eq.s32.totalorder %s30, 0
      %p150 = por %p148, %p149
      %p151 = scmp.ne.s32.totalorder %s137, %s138
      %p152 = scmp.eq.s32.totalorder %s31, 2
      %p153 = por %p151, %p152
      %p155 = scmp.ne.s32.totalorder %s138, %s154
      %p156 = scmp.eq.s32.totalorder %s31, 0
      %p157 = por %p155, %p156
      %s159 = sadd.s32 %s158, 1
      %p162 = scmp.eq.s32.totalorder %s25, 2
      %p163 = scmp.ne.s32.totalorder %s158, %s160
      %p164 = scmp.eq.s32.totalorder %s25, 0
      %p165 = por %p163, %p164
      %p166 = scmp.ne.s32.totalorder %s158, %s160
      %p167 = scmp.eq.s32.totalorder %s30, 2
      %p168 = por %p166, %p167
      %p169 = scmp.ne.s32.totalorder %s160, %s161
      %p170 = scmp.eq.s32.totalorder %s30, 0
      %p171 = por %p169, %p170
      %p172 = scmp.ne.s32.totalorder %s160, %s161
      %p173 = scmp.eq.s32.totalorder %s31, 2
      %p174 = por %p172, %p173
      %p176 = scmp.ne.s32.totalorder %s161, %s175
      %p177 = scmp.eq.s32.totalorder %s31, 0
      %p178 = por %p176, %p177
      %s179 = ssub.s32 %s25, %s32
      %p180 = scmp.eq.s32.totalorder %s179, 0
      %s182 = sadd.s32 %s181, 1
      %s183 = scalar_select %p180, %s181, %s182
      %p186 = pneg %p180
      %p187 = scmp.eq.s32.totalorder %s25, 2
      %p188 = por %p186, %p187
      %p189 = scmp.ne.s32.totalorder %s181, %s184
      %p190 = scmp.eq.s32.totalorder %s25, 0
      %p191 = por %p189, %p190
      %p192 = scmp.ne.s32.totalorder %s181, %s184
      %p193 = scmp.eq.s32.totalorder %s30, 2
      %p194 = por %p192, %p193
      %p195 = scmp.ne.s32.totalorder %s184, %s185
      %p196 = scmp.eq.s32.totalorder %s30, 0
      %p197 = por %p195, %p196
      %p198 = scmp.ne.s32.totalorder %s184, %s185
      %p199 = scmp.eq.s32.totalorder %s31, 2
      %p200 = por %p198, %p199
      %p202 = scmp.ne.s32.totalorder %s185, %s201
      %p203 = scmp.eq.s32.totalorder %s31, 0
      %p204 = por %p202, %p203
      %s205 = ssub.s32 %s25, %s32
      %p206 = scmp.eq.s32.totalorder %s205, 0
      %s208 = sadd.s32 %s207, 1
      %s209 = scalar_select %p206, %s207, %s208
      %p212 = pneg %p206
      %p213 = scmp.eq.s32.totalorder %s25, 2
      %p214 = por %p212, %p213
      %p215 = scmp.ne.s32.totalorder %s207, %s210
      %p216 = scmp.eq.s32.totalorder %s25, 0
      %p217 = por %p215, %p216
      %p218 = scmp.ne.s32.totalorder %s207, %s210
      %p219 = scmp.eq.s32.totalorder %s30, 2
      %p220 = por %p218, %p219
      %p221 = scmp.ne.s32.totalorder %s210, %s211
      %p222 = scmp.eq.s32.totalorder %s30, 0
      %p223 = por %p221, %p222
      %p224 = scmp.ne.s32.totalorder %s210, %s211
      %p225 = scmp.eq.s32.totalorder %s31, 2
      %p226 = por %p224, %p225
      %p228 = scmp.ne.s32.totalorder %s211, %s227
      %p229 = scmp.eq.s32.totalorder %s31, 0
      %p230 = por %p228, %p229
      %p231 = scmp.le.s32.totalorder 1, %s25
      %p232 = scmp.lt.s32.totalorder %s25, 4
      %p233 = pnand %p231, %p232
      %p234 = pneg %p233
      // Predicated region
      $region9: #{tpu_custom_call.1} parent=5 // pred_check
        _
      $region10: #{tpu_custom_call.1} parent=5 // pred_check_branch
        %236 = sbr.rel (%p233) target = $region12
      $region11: #{tpu_custom_call.1} parent=5 // pred_region
        %s237 = ssub.s32 %s25, 1
        // Predicated region
        $region13: #{tpu_custom_call.1} parent=11 // pred_check
          %p238 = pneg %p46
        $region14: #{tpu_custom_call.1} parent=11 // pred_check_branch
          %240 = sbr.rel (%p238) target = $region16
        $region15: #{tpu_custom_call.1} parent=11 // pred_region
          %s242 = ssub.s32 256, 256
          %243 = vsyncadd [#allocation4], %s242
          %s245 = sshll.u32 [#allocation3], 4
          %s246 = int_to_ptr.vmem [resolvable:$true] %s245
          %248 = dma.hbm_to_vmem [thread:$0]  %s0, 256, %s246, [#allocation4]
        $region16: #{tpu_custom_call.1} parent=11 // pred_fallthru
          _
      $region12: #{tpu_custom_call.1} parent=5 // pred_fallthru
        _
      %p249 = scmp.lt.s32.totalorder %s25, 3
      // Predicated region
      $region17: #{tpu_custom_call.1} parent=5 // pred_check
        %p250 = pneg %p249
      $region18: #{tpu_custom_call.1} parent=5 // pred_check_branch
        %252 = sbr.rel (%p250) target = $region20
      $region19: #{tpu_custom_call.1} parent=5 // pred_region
        // Predicated region
        $region21: #{tpu_custom_call.1} parent=19 // pred_check
          %p253 = pneg %p66
        $region22: #{tpu_custom_call.1} parent=19 // pred_check_branch
          %255 = sbr.rel (%p253) target = $region24
        $region23: #{tpu_custom_call.1} parent=19 // pred_region
          %s256 = sand.u32 %s25, 1
          %s257 = scalar_lea.sflag [#allocation7], %s256
          %s258 = sand.u32 %s56, 1
          %s259 = smul.addr %s258, 8
          %s260 = scalar_lea.vmem [#allocation6], %s259
          %s262 = ssub.s32 128, 128
          %263 = vsyncadd %s257, %s262
          %s264 = smul.addr %s25, 128
          %s265 = scalar_lea.hbm %s1, %s264
          %s267 = sshll.u32 %s260, 4
          %s268 = int_to_ptr.vmem [resolvable:$true] %s267
          %270 = dma.hbm_to_vmem [thread:$0]  %s265, 128, %s268, %s257
        $region24: #{tpu_custom_call.1} parent=19 // pred_fallthru
          _
        // Predicated region
        $region25: #{tpu_custom_call.1} parent=19 // pred_check
          %p271 = pneg %p92
        $region26: #{tpu_custom_call.1} parent=19 // pred_check_branch
          %273 = sbr.rel (%p271) target = $region28
        $region27: #{tpu_custom_call.1} parent=19 // pred_region
          %s274 = sand.u32 %s25, 1
          %s275 = scalar_lea.sflag [#allocation7], %s274
          %s276 = sand.u32 %s82, 1
          %s277 = smul.addr %s276, 8
          %s278 = scalar_lea.vmem [#allocation8], %s277
          %s280 = ssub.s32 128, 128
          %281 = vsyncadd %s275, %s280
          %s282 = smul.addr %s25, 128
          %s283 = scalar_lea.hbm %s2, %s282
          %s285 = sshll.u32 %s278, 4
          %s286 = int_to_ptr.vmem [resolvable:$true] %s285
          %288 = dma.hbm_to_vmem [thread:$0]  %s283, 128, %s286, %s275
        $region28: #{tpu_custom_call.1} parent=19 // pred_fallthru
          _
        // Predicated region
        $region29: #{tpu_custom_call.1} parent=19 // pred_check
          %p289 = pneg %p118
        $region30: #{tpu_custom_call.1} parent=19 // pred_check_branch
          %291 = sbr.rel (%p289) target = $region32
        $region31: #{tpu_custom_call.1} parent=19 // pred_region
          %s292 = sand.u32 %s25, 1
          %s293 = scalar_lea.sflag [#allocation10], %s292
          %s294 = sand.u32 %s108, 1
          %s295 = smul.addr %s294, 512
          %s296 = scalar_lea.vmem [#allocation9], %s295
          %s298 = ssub.s32 8192, 8192
          %299 = vsyncadd %s293, %s298
          %s300 = smul.addr %s25, 128
          %s301 = smul.addr %s300, 64
          %s302 = scalar_lea.hbm %s3, %s301
          %s303 = sshll.u32 %s296, 4
          %s304 = int_to_ptr.vmem [resolvable:$true] %s303
          %309 = dma.hbm_to_vmem [thread:$0]  %s302, 8192, %s304, %s293, 256, 256, 16
        $region32: #{tpu_custom_call.1} parent=19 // pred_fallthru
          _
        // Predicated region
        $region33: #{tpu_custom_call.1} parent=19 // pred_check
          %p310 = pneg %p144
        $region34: #{tpu_custom_call.1} parent=19 // pred_check_branch
          %312 = sbr.rel (%p310) target = $region36
        $region35: #{tpu_custom_call.1} parent=19 // pred_region
          %s313 = sand.u32 %s25, 1
          %s314 = scalar_lea.sflag [#allocation10], %s313
          %s315 = sand.u32 %s134, 1
          %s316 = smul.addr %s315, 4
          %s317 = scalar_lea.vmem [#allocation11], %s316
          %s319 = ssub.s32 64, 64
          %320 = vsyncadd %s314, %s319
          %s321 = smul.addr %s25, 4
          %s322 = smul.addr %s321, 16
          %s323 = scalar_lea.hbm %s4, %s322
          %s325 = sshll.u32 %s317, 4
          %s326 = int_to_ptr.vmem [resolvable:$true] %s325
          %328 = dma.hbm_to_vmem [thread:$0]  %s323, 64, %s326, %s314
        $region36: #{tpu_custom_call.1} parent=19 // pred_fallthru
          _
      $region20: #{tpu_custom_call.1} parent=5 // pred_fallthru
        _
      %p329 = scmp.le.s32.totalorder 1, %s25
      %p330 = scmp.lt.s32.totalorder %s25, 4
      %p331 = pnand %p329, %p330
      %p332 = pneg %p331
      // Predicated region
      $region37: #{tpu_custom_call.1} parent=5 // pred_check
        _
      $region38: #{tpu_custom_call.1} parent=5 // pred_check_branch
        %334 = sbr.rel (%p331) target = $region40
      $region39: #{tpu_custom_call.1} parent=5 // pred_region
        %s335 = ssub.s32 %s25, 1
        // Predicated region
        $region41: #{tpu_custom_call.1} parent=39 // pred_check
          %p336 = pneg %p46
        $region42: #{tpu_custom_call.1} parent=39 // pred_check_branch
          %338 = sbr.rel (%p336) target = $region44
        $region43: #{tpu_custom_call.1} parent=39 // pred_region
          %339 = dma.done [#allocation4], 256
        $region44: #{tpu_custom_call.1} parent=39 // pred_fallthru
          _
        %s340 = sand.u32 %s30, 1
        %s341 = scalar_lea.sflag [#allocation7], %s340
        %s342 = sand.u32 %s59, 1
        %s343 = smul.addr %s342, 8
        %s344 = scalar_lea.vmem [#allocation6], %s343
        // Predicated region
        $region45: #{tpu_custom_call.1} parent=39 // pred_check
          %p345 = pneg %p72
        $region46: #{tpu_custom_call.1} parent=39 // pred_check_branch
          %347 = sbr.rel (%p345) target = $region48
        $region47: #{tpu_custom_call.1} parent=39 // pred_region
          %348 = dma.done %s341, 128
        $region48: #{tpu_custom_call.1} parent=39 // pred_fallthru
          _
        %s349 = sand.u32 %s30, 1
        %s350 = scalar_lea.sflag [#allocation7], %s349
        %s351 = sand.u32 %s85, 1
        %s352 = smul.addr %s351, 8
        %s353 = scalar_lea.vmem [#allocation8], %s352
        // Predicated region
        $region49: #{tpu_custom_call.1} parent=39 // pred_check
          %p354 = pneg %p98
        $region50: #{tpu_custom_call.1} parent=39 // pred_check_branch
          %356 = sbr.rel (%p354) target = $region52
        $region51: #{tpu_custom_call.1} parent=39 // pred_region
          %357 = dma.done %s350, 128
        $region52: #{tpu_custom_call.1} parent=39 // pred_fallthru
          _
        %s358 = sand.u32 %s30, 1
        %s359 = scalar_lea.sflag [#allocation10], %s358
        %s360 = sand.u32 %s111, 1
        %s361 = smul.addr %s360, 512
        %s362 = scalar_lea.vmem [#allocation9], %s361
        // Predicated region
        $region53: #{tpu_custom_call.1} parent=39 // pred_check
          %p363 = pneg %p124
        $region54: #{tpu_custom_call.1} parent=39 // pred_check_branch
          %365 = sbr.rel (%p363) target = $region56
        $region55: #{tpu_custom_call.1} parent=39 // pred_region
          %366 = dma.done %s359, 8192
        $region56: #{tpu_custom_call.1} parent=39 // pred_fallthru
          _
        %s367 = sand.u32 %s30, 1
        %s368 = scalar_lea.sflag [#allocation10], %s367
        %s369 = sand.u32 %s137, 1
        %s370 = smul.addr %s369, 4
        %s371 = scalar_lea.vmem [#allocation11], %s370
        // Predicated region
        $region57: #{tpu_custom_call.1} parent=39 // pred_check
          %p372 = pneg %p150
        $region58: #{tpu_custom_call.1} parent=39 // pred_check_branch
          %374 = sbr.rel (%p372) target = $region60
        $region59: #{tpu_custom_call.1} parent=39 // pred_region
          %375 = dma.done %s368, 64
        $region60: #{tpu_custom_call.1} parent=39 // pred_fallthru
          _
        %p376 = pneg %p46
        %p377 = pneg %p43
        %s378 = sand.u32 %s30, 1
        %s379 = scalar_lea.sflag [#allocation7], %s378
        %s380 = sand.u32 %s59, 1
        %s381 = smul.addr %s380, 8
        %s382 = scalar_lea.vmem [#allocation6], %s381
        %p383 = pneg %p72
        %p384 = pneg %p69
        %s385 = sand.u32 %s30, 1
        %s386 = scalar_lea.sflag [#allocation7], %s385
        %s387 = sand.u32 %s85, 1
        %s388 = smul.addr %s387, 8
        %s389 = scalar_lea.vmem [#allocation8], %s388
        %p390 = pneg %p98
        %p391 = pneg %p95
        %s392 = sand.u32 %s30, 1
        %s393 = scalar_lea.sflag [#allocation10], %s392
        %s394 = sand.u32 %s111, 1
        %s395 = smul.addr %s394, 512
        %s396 = scalar_lea.vmem [#allocation9], %s395
        %p397 = pneg %p124
        %p398 = pneg %p121
        %s399 = sand.u32 %s30, 1
        %s400 = scalar_lea.sflag [#allocation10], %s399
        %s401 = sand.u32 %s137, 1
        %s402 = smul.addr %s401, 4
        %s403 = scalar_lea.vmem [#allocation11], %s402
        %p404 = pneg %p150
        %p405 = pneg %p147
        %p406 = pneg %p171
        %p407 = pneg %p168
        %p408 = pneg %p197
        %p409 = pneg %p194
        %s410 = sand.u32 %s30, 1
        %s411 = scalar_lea.sflag [#allocation14], %s410
        %s412 = sand.u32 %s184, 1
        %s413 = smul.addr %s412, 8
        %s414 = scalar_lea.vmem [#allocation13], %s413
        %p415 = pneg %p223
        %p416 = pneg %p220
        %s417 = sand.u32 %s30, 1
        %s418 = scalar_lea.sflag [#allocation14], %s417
        %s419 = sand.u32 %s210, 1
        %s420 = smul.addr %s419, 8
        %s421 = scalar_lea.vmem [#allocation15], %s420
        %p422 = scmp.eq.s32.totalorder %s30, 0
        // Predicated region
        $region61: #{tpu_custom_call.1} parent=39 // pred_check
          %p423 = pneg %p422
        $region62: #{tpu_custom_call.1} parent=39 // pred_check_branch
          %425 = sbr.rel (%p423) target = $region64
        $region63: #{tpu_custom_call.1} parent=39 // pred_region
          %v426 = vld [vmem:[#allocation3] sm:$0xff]
          %v427 = vld [vmem:[#allocation3 + $0x8] sm:$0xff]
          %428 = vst [vmem:[#allocation2] sm:$0xff] %v426
          %429 = vst [vmem:[#allocation2 + $0x8] sm:$0xff] %v427
        $region64: #{tpu_custom_call.1} parent=39 // pred_fallthru
          _
        %v430 = vld [vmem:[%s344] sm:$0xff]
        %431 = vst [vmem:[#allocation2 + $0x8] sm:$0xff] %v430
        %v432 = vld [vmem:[#allocation2] sm:$0xff]
        %v433 = vld [vmem:[#allocation2 + $0x8] sm:$0xff]
        %v434 = vpack.c.bf16 %v432, %v432
        %v435 = vpack.c.bf16 %v433, %v433
        %v436 = vld [vmem:[%s362] sm:$0xff]
        %v437 = vld [vmem:[%s362 + $0x8] sm:$0xff]
        %v438 = vld [vmem:[%s362 + $0x10] sm:$0xff]
        %v439 = vld [vmem:[%s362 + $0x18] sm:$0xff]
        %v440 = vld [vmem:[%s362 + $0x20] sm:$0xff]
        %v441 = vld [vmem:[%s362 + $0x28] sm:$0xff]
        %v442 = vld [vmem:[%s362 + $0x30] sm:$0xff]
        %v443 = vld [vmem:[%s362 + $0x38] sm:$0xff]
        %v444 = vld [vmem:[%s362 + $0x40] sm:$0xff]
        %v445 = vld [vmem:[%s362 + $0x48] sm:$0xff]
        %v446 = vld [vmem:[%s362 + $0x50] sm:$0xff]
        %v447 = vld [vmem:[%s362 + $0x58] sm:$0xff]
        %v448 = vld [vmem:[%s362 + $0x60] sm:$0xff]
        %v449 = vld [vmem:[%s362 + $0x68] sm:$0xff]
        %v450 = vld [vmem:[%s362 + $0x70] sm:$0xff]
        %v451 = vld [vmem:[%s362 + $0x78] sm:$0xff]
        %v452 = vld [vmem:[%s362 + $0x80] sm:$0xff]
        %v453 = vld [vmem:[%s362 + $0x88] sm:$0xff]
        %v454 = vld [vmem:[%s362 + $0x90] sm:$0xff]
        %v455 = vld [vmem:[%s362 + $0x98] sm:$0xff]
        %v456 = vld [vmem:[%s362 + $0xa0] sm:$0xff]
        %v457 = vld [vmem:[%s362 + $0xa8] sm:$0xff]
        %v458 = vld [vmem:[%s362 + $0xb0] sm:$0xff]
        %v459 = vld [vmem:[%s362 + $0xb8] sm:$0xff]
        %v460 = vld [vmem:[%s362 + $0xc0] sm:$0xff]
        %v461 = vld [vmem:[%s362 + $0xc8] sm:$0xff]
        %v462 = vld [vmem:[%s362 + $0xd0] sm:$0xff]
        %v463 = vld [vmem:[%s362 + $0xd8] sm:$0xff]
        %v464 = vld [vmem:[%s362 + $0xe0] sm:$0xff]
        %v465 = vld [vmem:[%s362 + $0xe8] sm:$0xff]
        %v466 = vld [vmem:[%s362 + $0xf0] sm:$0xff]
        %v467 = vld [vmem:[%s362 + $0xf8] sm:$0xff]
        %v468 = vld [vmem:[%s362 + $0x100] sm:$0xff]
        %v469 = vld [vmem:[%s362 + $0x108] sm:$0xff]
        %v470 = vld [vmem:[%s362 + $0x110] sm:$0xff]
        %v471 = vld [vmem:[%s362 + $0x118] sm:$0xff]
        %v472 = vld [vmem:[%s362 + $0x120] sm:$0xff]
        %v473 = vld [vmem:[%s362 + $0x128] sm:$0xff]
        %v474 = vld [vmem:[%s362 + $0x130] sm:$0xff]
        %v475 = vld [vmem:[%s362 + $0x138] sm:$0xff]
        %v476 = vld [vmem:[%s362 + $0x140] sm:$0xff]
        %v477 = vld [vmem:[%s362 + $0x148] sm:$0xff]
        %v478 = vld [vmem:[%s362 + $0x150] sm:$0xff]
        %v479 = vld [vmem:[%s362 + $0x158] sm:$0xff]
        %v480 = vld [vmem:[%s362 + $0x160] sm:$0xff]
        %v481 = vld [vmem:[%s362 + $0x168] sm:$0xff]
        %v482 = vld [vmem:[%s362 + $0x170] sm:$0xff]
        %v483 = vld [vmem:[%s362 + $0x178] sm:$0xff]
        %v484 = vld [vmem:[%s362 + $0x180] sm:$0xff]
        %v485 = vld [vmem:[%s362 + $0x188] sm:$0xff]
        %v486 = vld [vmem:[%s362 + $0x190] sm:$0xff]
        %v487 = vld [vmem:[%s362 + $0x198] sm:$0xff]
        %v488 = vld [vmem:[%s362 + $0x1a0] sm:$0xff]
        %v489 = vld [vmem:[%s362 + $0x1a8] sm:$0xff]
        %v490 = vld [vmem:[%s362 + $0x1b0] sm:$0xff]
        %v491 = vld [vmem:[%s362 + $0x1b8] sm:$0xff]
        %v492 = vld [vmem:[%s362 + $0x1c0] sm:$0xff]
        %v493 = vld [vmem:[%s362 + $0x1c8] sm:$0xff]
        %v494 = vld [vmem:[%s362 + $0x1d0] sm:$0xff]
        %v495 = vld [vmem:[%s362 + $0x1d8] sm:$0xff]
        %v496 = vld [vmem:[%s362 + $0x1e0] sm:$0xff]
        %v497 = vld [vmem:[%s362 + $0x1e8] sm:$0xff]
        %v498 = vld [vmem:[%s362 + $0x1f0] sm:$0xff]
        %v499 = vld [vmem:[%s362 + $0x1f8] sm:$0xff]
        %v500 = vld [vmem:[%s371] sm:$0xf]
        %v502 = vlaneseq
        %v503 = vshrl.u32 %v502, 7
        %v504 = vsub.s32 0, %v503
        %v505 = vrot.slane %v500, %v504
        %v506 = vlaneseq
        %v507 = vshrl.u32 %v506, 7
        %v508 = vsub.s32 1, %v507
        %v509 = vrot.slane %v500, %v508
        %v510 = vlaneseq
        %v511 = vshrl.u32 %v510, 7
        %v512 = vsub.s32 2, %v511
        %v513 = vrot.slane %v500, %v512
        %v514 = vlaneseq
        %v515 = vshrl.u32 %v514, 7
        %v516 = vsub.s32 3, %v515
        %v517 = vrot.slane %v500, %v516
        %v586 = vunpack.c.l.b16 %v436
        %v587 = vunpack.c.h.b16 %v436
        %v588 = vunpack.c.l.b16 %v437
        %v589 = vunpack.c.h.b16 %v437
        %v590 = vunpack.c.l.b16 %v438
        %v591 = vunpack.c.h.b16 %v438
        %v592 = vunpack.c.l.b16 %v439
        %v593 = vunpack.c.h.b16 %v439
        %v594 = vunpack.c.l.b16 %v440
        %v595 = vunpack.c.h.b16 %v440
        %v596 = vunpack.c.l.b16 %v441
        %v597 = vunpack.c.h.b16 %v441
        %v598 = vunpack.c.l.b16 %v442
        %v599 = vunpack.c.h.b16 %v442
        %v600 = vunpack.c.l.b16 %v443
        %v601 = vunpack.c.h.b16 %v443
        %v602 = vunpack.c.l.b16 %v444
        %v603 = vunpack.c.h.b16 %v444
        %v604 = vunpack.c.l.b16 %v445
        %v605 = vunpack.c.h.b16 %v445
        %v606 = vunpack.c.l.b16 %v446
        %v607 = vunpack.c.h.b16 %v446
        %v608 = vunpack.c.l.b16 %v447
        %v609 = vunpack.c.h.b16 %v447
        %v610 = vunpack.c.l.b16 %v448
        %v611 = vunpack.c.h.b16 %v448
        %v612 = vunpack.c.l.b16 %v449
        %v613 = vunpack.c.h.b16 %v449
        %v614 = vunpack.c.l.b16 %v450
        %v615 = vunpack.c.h.b16 %v450
        %v616 = vunpack.c.l.b16 %v451
        %v617 = vunpack.c.h.b16 %v451
        %v618 = vunpack.c.l.b16 %v452
        %v619 = vunpack.c.h.b16 %v452
        %v620 = vunpack.c.l.b16 %v453
        %v621 = vunpack.c.h.b16 %v453
        %v622 = vunpack.c.l.b16 %v454
        %v623 = vunpack.c.h.b16 %v454
        %v624 = vunpack.c.l.b16 %v455
        %v625 = vunpack.c.h.b16 %v455
        %v626 = vunpack.c.l.b16 %v456
        %v627 = vunpack.c.h.b16 %v456
        %v628 = vunpack.c.l.b16 %v457
        %v629 = vunpack.c.h.b16 %v457
        %v630 = vunpack.c.l.b16 %v458
        %v631 = vunpack.c.h.b16 %v458
        %v632 = vunpack.c.l.b16 %v459
        %v633 = vunpack.c.h.b16 %v459
        %v634 = vunpack.c.l.b16 %v460
        %v635 = vunpack.c.h.b16 %v460
        %v636 = vunpack.c.l.b16 %v461
        %v637 = vunpack.c.h.b16 %v461
        %v638 = vunpack.c.l.b16 %v462
        %v639 = vunpack.c.h.b16 %v462
        %v640 = vunpack.c.l.b16 %v463
        %v641 = vunpack.c.h.b16 %v463
        %v642 = vunpack.c.l.b16 %v464
        %v643 = vunpack.c.h.b16 %v464
        %v644 = vunpack.c.l.b16 %v465
        %v645 = vunpack.c.h.b16 %v465
        %v646 = vunpack.c.l.b16 %v466
        %v647 = vunpack.c.h.b16 %v466
        %v648 = vunpack.c.l.b16 %v467
        %v649 = vunpack.c.h.b16 %v467
        %v650 = vunpack.c.l.b16 %v468
        %v651 = vunpack.c.h.b16 %v468
        %v652 = vunpack.c.l.b16 %v469
        %v653 = vunpack.c.h.b16 %v469
        %v654 = vunpack.c.l.b16 %v470
        %v655 = vunpack.c.h.b16 %v470
        %v656 = vunpack.c.l.b16 %v471
        %v657 = vunpack.c.h.b16 %v471
        %v658 = vunpack.c.l.b16 %v472
        %v659 = vunpack.c.h.b16 %v472
        %v660 = vunpack.c.l.b16 %v473
        %v661 = vunpack.c.h.b16 %v473
        %v662 = vunpack.c.l.b16 %v474
        %v663 = vunpack.c.h.b16 %v474
        %v664 = vunpack.c.l.b16 %v475
        %v665 = vunpack.c.h.b16 %v475
        %v666 = vunpack.c.l.b16 %v476
        %v667 = vunpack.c.h.b16 %v476
        %v668 = vunpack.c.l.b16 %v477
        %v669 = vunpack.c.h.b16 %v477
        %v670 = vunpack.c.l.b16 %v478
        %v671 = vunpack.c.h.b16 %v478
        %v672 = vunpack.c.l.b16 %v479
        %v673 = vunpack.c.h.b16 %v479
        %v674 = vunpack.c.l.b16 %v480
        %v675 = vunpack.c.h.b16 %v480
        %v676 = vunpack.c.l.b16 %v481
        %v677 = vunpack.c.h.b16 %v481
        %v678 = vunpack.c.l.b16 %v482
        %v679 = vunpack.c.h.b16 %v482
        %v680 = vunpack.c.l.b16 %v483
        %v681 = vunpack.c.h.b16 %v483
        %v682 = vunpack.c.l.b16 %v484
        %v683 = vunpack.c.h.b16 %v484
        %v684 = vunpack.c.l.b16 %v485
        %v685 = vunpack.c.h.b16 %v485
        %v686 = vunpack.c.l.b16 %v486
        %v687 = vunpack.c.h.b16 %v486
        %v688 = vunpack.c.l.b16 %v487
        %v689 = vunpack.c.h.b16 %v487
        %v690 = vunpack.c.l.b16 %v488
        %v691 = vunpack.c.h.b16 %v488
        %v692 = vunpack.c.l.b16 %v489
        %v693 = vunpack.c.h.b16 %v489
        %v694 = vunpack.c.l.b16 %v490
        %v695 = vunpack.c.h.b16 %v490
        %v696 = vunpack.c.l.b16 %v491
        %v697 = vunpack.c.h.b16 %v491
        %v698 = vunpack.c.l.b16 %v492
        %v699 = vunpack.c.h.b16 %v492
        %v700 = vunpack.c.l.b16 %v493
        %v701 = vunpack.c.h.b16 %v493
        %v702 = vunpack.c.l.b16 %v494
        %v703 = vunpack.c.h.b16 %v494
        %v704 = vunpack.c.l.b16 %v495
        %v705 = vunpack.c.h.b16 %v495
        %v706 = vunpack.c.l.b16 %v496
        %v707 = vunpack.c.h.b16 %v496
        %v708 = vunpack.c.l.b16 %v497
        %v709 = vunpack.c.h.b16 %v497
        %v710 = vunpack.c.l.b16 %v498
        %v711 = vunpack.c.h.b16 %v498
        %v712 = vunpack.c.l.b16 %v499
        %v713 = vunpack.c.h.b16 %v499
        %v714 = vpack.c.b16 %v590, %v586
        %v715 = vpack.c.b16 %v591, %v587
        %v716 = vpack.c.b16 %v592, %v588
        %v717 = vpack.c.b16 %v593, %v589
        %v718 = vpack.c.b16 %v598, %v594
        %v719 = vpack.c.b16 %v599, %v595
        %v720 = vpack.c.b16 %v600, %v596
        %v721 = vpack.c.b16 %v601, %v597
        %v722 = vpack.c.b16 %v606, %v602
        %v723 = vpack.c.b16 %v607, %v603
        %v724 = vpack.c.b16 %v608, %v604
        %v725 = vpack.c.b16 %v609, %v605
        %v726 = vpack.c.b16 %v614, %v610
        %v727 = vpack.c.b16 %v615, %v611
        %v728 = vpack.c.b16 %v616, %v612
        %v729 = vpack.c.b16 %v617, %v613
        %v730 = vpack.c.b16 %v622, %v618
        %v731 = vpack.c.b16 %v623, %v619
        %v732 = vpack.c.b16 %v624, %v620
        %v733 = vpack.c.b16 %v625, %v621
        %v734 = vpack.c.b16 %v630, %v626
        %v735 = vpack.c.b16 %v631, %v627
        %v736 = vpack.c.b16 %v632, %v628
        %v737 = vpack.c.b16 %v633, %v629
        %v738 = vpack.c.b16 %v638, %v634
        %v739 = vpack.c.b16 %v639, %v635
        %v740 = vpack.c.b16 %v640, %v636
        %v741 = vpack.c.b16 %v641, %v637
        %v742 = vpack.c.b16 %v646, %v642
        %v743 = vpack.c.b16 %v647, %v643
        %v744 = vpack.c.b16 %v648, %v644
        %v745 = vpack.c.b16 %v649, %v645
        %v746 = vpack.c.b16 %v654, %v650
        %v747 = vpack.c.b16 %v655, %v651
        %v748 = vpack.c.b16 %v656, %v652
        %v749 = vpack.c.b16 %v657, %v653
        %v750 = vpack.c.b16 %v662, %v658
        %v751 = vpack.c.b16 %v663, %v659
        %v752 = vpack.c.b16 %v664, %v660
        %v753 = vpack.c.b16 %v665, %v661
        %v754 = vpack.c.b16 %v670, %v666
        %v755 = vpack.c.b16 %v671, %v667
        %v756 = vpack.c.b16 %v672, %v668
        %v757 = vpack.c.b16 %v673, %v669
        %v758 = vpack.c.b16 %v678, %v674
        %v759 = vpack.c.b16 %v679, %v675
        %v760 = vpack.c.b16 %v680, %v676
        %v761 = vpack.c.b16 %v681, %v677
        %v762 = vpack.c.b16 %v686, %v682
        %v763 = vpack.c.b16 %v687, %v683
        %v764 = vpack.c.b16 %v688, %v684
        %v765 = vpack.c.b16 %v689, %v685
        %v766 = vpack.c.b16 %v694, %v690
        %v767 = vpack.c.b16 %v695, %v691
        %v768 = vpack.c.b16 %v696, %v692
        %v769 = vpack.c.b16 %v697, %v693
        %v770 = vpack.c.b16 %v702, %v698
        %v771 = vpack.c.b16 %v703, %v699
        %v772 = vpack.c.b16 %v704, %v700
        %v773 = vpack.c.b16 %v705, %v701
        %v774 = vpack.c.b16 %v710, %v706
        %v775 = vpack.c.b16 %v711, %v707
        %v776 = vpack.c.b16 %v712, %v708
        %v777 = vpack.c.b16 %v713, %v709
        %842 = vmatprep.subr.bf16.mxu0 %v743
        %843 = vmatpush1.bf16.msra.mxu0 %v742
        %844 = vmatprep.subr.bf16.mxu0 %v739
        %845 = vmatpush1.bf16.msra.mxu0 %v738
        %846 = vmatprep.subr.bf16.mxu0 %v735
        %847 = vmatpush1.bf16.msra.mxu0 %v734
        %848 = vmatprep.subr.bf16.mxu0 %v731
        %849 = vmatpush1.bf16.msra.mxu0 %v730
        %850 = vmatprep.subr.bf16.mxu0 %v727
        %851 = vmatpush1.bf16.msra.mxu0 %v726
        %852 = vmatprep.subr.bf16.mxu0 %v723
        %853 = vmatpush1.bf16.msra.mxu0 %v722
        %854 = vmatprep.subr.bf16.mxu0 %v719
        %855 = vmatpush1.bf16.msra.mxu0 %v718
        %856 = vmatprep.subr.bf16.mxu0 %v715
        %857 = vmatpush1.bf16.msra.mxu0 %v714
        %858 = vmatprep.subr.bf16.mxu0 %v775
        %859 = vmatpush2.bf16.msra.mxu0 %v774
        %860 = vmatprep.subr.bf16.mxu0 %v771
        %861 = vmatpush2.bf16.msra.mxu0 %v770
        %862 = vmatprep.subr.bf16.mxu0 %v767
        %863 = vmatpush2.bf16.msra.mxu0 %v766
        %864 = vmatprep.subr.bf16.mxu0 %v763
        %865 = vmatpush2.bf16.msra.mxu0 %v762
        %866 = vmatprep.subr.bf16.mxu0 %v759
        %867 = vmatpush2.bf16.msra.mxu0 %v758
        %868 = vmatprep.subr.bf16.mxu0 %v755
        %869 = vmatpush2.bf16.msra.mxu0 %v754
        %870 = vmatprep.subr.bf16.mxu0 %v751
        %871 = vmatpush2.bf16.msra.mxu0 %v750
        %872 = vmatprep.subr.bf16.mxu0 %v747
        %873 = vmatpush2.bf16.msra.mxu0 %v746
        %874 = vmatprep.mubr.bf16.mxu0 %v435
        %875 = vmatmul.mubr.bf16.gmra.mxu0 %v434
        %v876 = vpop.f32.mrf.mxu0
        %v877 = vadd.f32 %v505, %v876
        %v878 = vpop.f32.mrf.mxu0
        %v879 = vadd.f32 %v509, %v878
        %v880 = vpop.f32.mrf.mxu0
        %v881 = vpop.f32.mrf.mxu0
        %882 = vdwg.mxu0
        %883 = vmatprep.subr.bf16.mxu0 %v745
        %884 = vmatpush1.bf16.msra.mxu0 %v744
        %885 = vmatprep.subr.bf16.mxu0 %v741
        %886 = vmatpush1.bf16.msra.mxu0 %v740
        %887 = vmatprep.subr.bf16.mxu0 %v737
        %888 = vmatpush1.bf16.msra.mxu0 %v736
        %889 = vmatprep.subr.bf16.mxu0 %v733
        %890 = vmatpush1.bf16.msra.mxu0 %v732
        %891 = vmatprep.subr.bf16.mxu0 %v729
        %892 = vmatpush1.bf16.msra.mxu0 %v728
        %893 = vmatprep.subr.bf16.mxu0 %v725
        %894 = vmatpush1.bf16.msra.mxu0 %v724
        %895 = vmatprep.subr.bf16.mxu0 %v721
        %896 = vmatpush1.bf16.msra.mxu0 %v720
        %897 = vmatprep.subr.bf16.mxu0 %v717
        %898 = vmatpush1.bf16.msra.mxu0 %v716
        %899 = vmatprep.subr.bf16.mxu0 %v777
        %900 = vmatpush2.bf16.msra.mxu0 %v776
        %901 = vmatprep.subr.bf16.mxu0 %v773
        %902 = vmatpush2.bf16.msra.mxu0 %v772
        %903 = vmatprep.subr.bf16.mxu0 %v769
        %904 = vmatpush2.bf16.msra.mxu0 %v768
        %905 = vmatprep.subr.bf16.mxu0 %v765
        %906 = vmatpush2.bf16.msra.mxu0 %v764
        %907 = vmatprep.subr.bf16.mxu0 %v761
        %908 = vmatpush2.bf16.msra.mxu0 %v760
        %909 = vmatprep.subr.bf16.mxu0 %v757
        %910 = vmatpush2.bf16.msra.mxu0 %v756
        %911 = vmatprep.subr.bf16.mxu0 %v753
        %912 = vmatpush2.bf16.msra.mxu0 %v752
        %913 = vmatprep.subr.bf16.mxu0 %v749
        %914 = vmatpush2.bf16.msra.mxu0 %v748
        %915 = vmatprep.mubr.bf16.mxu0 %v435
        %916 = vmatmul.mubr.bf16.gmra.mxu0 %v434
        %v917 = vpop.f32.mrf.mxu0
        %v918 = vadd.f32 %v513, %v917
        %v919 = vpop.f32.mrf.mxu0
        %v920 = vadd.f32 %v517, %v919
        %v921 = vpop.f32.mrf.mxu0
        %v922 = vpop.f32.mrf.mxu0
        %923 = vdwg.mxu0
        %v924 = vxor.u32 %v877, 2147483648
        %v925 = vmul.f32 %v924, 1.442695
        %v926 = vpow.pop %v925
        %v927 = vadd.f32 %v926, 1.0
        %v928 = vrcp.pop %v927
        %v929 = vmul.f32 1.0, %v928
        %v930 = vxor.u32 %v879, 2147483648
        %v931 = vmul.f32 %v930, 1.442695
        %v932 = vpow.pop %v931
        %v933 = vadd.f32 %v932, 1.0
        %v934 = vrcp.pop %v933
        %v935 = vmul.f32 1.0, %v934
        %v936 = vtanh.pop %v918
        %v937 = vxor.u32 %v920, 2147483648
        %v938 = vmul.f32 %v937, 1.442695
        %v939 = vpow.pop %v938
        %v940 = vadd.f32 %v939, 1.0
        %v941 = vrcp.pop %v940
        %v942 = vmul.f32 1.0, %v941
        %v943 = vld [vmem:[%s353] sm:$0xff]
        %v944 = vmul.f32 %v935, %v943
        %v945 = vmul.f32 %v929, %v936
        %v946 = vadd.f32 %v944, %v945
        %v947 = vtanh.pop %v946
        %v948 = vmul.f32 %v942, %v947
        %949 = vst [vmem:[%s414] sm:$0xff] %v948
        %950 = vst [vmem:[%s421] sm:$0xff] %v946
        %v951 = vld [vmem:[#allocation2] sm:$0xff]
        %v952 = vadd.f32 %v948, %v951
        %953 = vst [vmem:[#allocation12] sm:$0xff] %v952
        %954 = vst [vmem:[#allocation2] sm:$0xff] %v952
        %s955 = sand.u32 %s30, 1
        %s956 = scalar_lea.sflag [#allocation14], %s955
        %s957 = sand.u32 %s184, 1
        %s958 = smul.addr %s957, 8
        %s959 = scalar_lea.vmem [#allocation13], %s958
        %s960 = sand.u32 %s30, 1
        %s961 = scalar_lea.sflag [#allocation14], %s960
        %s962 = sand.u32 %s210, 1
        %s963 = smul.addr %s962, 8
        %s964 = scalar_lea.vmem [#allocation15], %s963
        // Predicated region
        $region65: #{tpu_custom_call.1} parent=39 // pred_check
          %p965 = pneg %p168
        $region66: #{tpu_custom_call.1} parent=39 // pred_check_branch
          %967 = sbr.rel (%p965) target = $region68
        $region67: #{tpu_custom_call.1} parent=39 // pred_region
          %s969 = ssub.s32 128, 128
          %970 = vsyncadd [#allocation5], %s969
          %s972 = sshll.u32 [#allocation12], 4
          %s973 = int_to_ptr.vmem [resolvable:$true] %s972
          %975 = dma.vmem_to_hbm [thread:$0]  %s973, 128, %s5, [#allocation5]
        $region68: #{tpu_custom_call.1} parent=39 // pred_fallthru
          _
        // Predicated region
        $region69: #{tpu_custom_call.1} parent=39 // pred_check
          %p976 = pneg %p194
        $region70: #{tpu_custom_call.1} parent=39 // pred_check_branch
          %978 = sbr.rel (%p976) target = $region72
        $region71: #{tpu_custom_call.1} parent=39 // pred_region
          %s980 = ssub.s32 128, 128
          %981 = vsyncadd %s956, %s980
          %s982 = smul.addr %s30, 128
          %s983 = scalar_lea.hbm %s6, %s982
          %s985 = sshll.u32 %s959, 4
          %s986 = int_to_ptr.vmem [resolvable:$true] %s985
          %988 = dma.vmem_to_hbm [thread:$0]  %s986, 128, %s983, %s956
        $region72: #{tpu_custom_call.1} parent=39 // pred_fallthru
          _
        // Predicated region
        $region73: #{tpu_custom_call.1} parent=39 // pred_check
          %p989 = pneg %p220
        $region74: #{tpu_custom_call.1} parent=39 // pred_check_branch
          %991 = sbr.rel (%p989) target = $region76
        $region75: #{tpu_custom_call.1} parent=39 // pred_region
          %s993 = ssub.s32 128, 128
          %994 = vsyncadd %s961, %s993
          %s995 = smul.addr %s30, 128
          %s996 = scalar_lea.hbm %s7, %s995
          %s998 = sshll.u32 %s964, 4
          %s999 = int_to_ptr.vmem [resolvable:$true] %s998
          %1001 = dma.vmem_to_hbm [thread:$0]  %s999, 128, %s996, %s961
        $region76: #{tpu_custom_call.1} parent=39 // pred_fallthru
          _
        // Predicated region
        $region77: #{tpu_custom_call.1} parent=39 // pred_check
          %p1002 = pneg %p168
        $region78: #{tpu_custom_call.1} parent=39 // pred_check_branch
          %1004 = sbr.rel (%p1002) target = $region80
        $region79: #{tpu_custom_call.1} parent=39 // pred_region
          %1005 = dma.done [#allocation5], 128
        $region80: #{tpu_custom_call.1} parent=39 // pred_fallthru
          _
      $region40: #{tpu_custom_call.1} parent=5 // pred_fallthru
        _
      %p1006 = scmp.le.s32.totalorder 2, %s25
      // Predicated region
      $region81: #{tpu_custom_call.1} parent=5 // pred_check
        %p1007 = pneg %p1006
      $region82: #{tpu_custom_call.1} parent=5 // pred_check_branch
        %1009 = sbr.rel (%p1007) target = $region84
      $region83: #{tpu_custom_call.1} parent=5 // pred_region
        %s1010 = ssub.s32 %s25, 2
        // Predicated region
        $region85: #{tpu_custom_call.1} parent=83 // pred_check
          %p1011 = pneg %p200
        $region86: #{tpu_custom_call.1} parent=83 // pred_check_branch
          %1013 = sbr.rel (%p1011) target = $region88
        $region87: #{tpu_custom_call.1} parent=83 // pred_region
          %s1014 = sand.u32 %s31, 1
          %s1015 = scalar_lea.sflag [#allocation14], %s1014
          %s1016 = sand.u32 %s185, 1
          %s1017 = smul.addr %s1016, 8
          %s1018 = scalar_lea.vmem [#allocation13], %s1017
          %1019 = dma.done %s1015, 128
        $region88: #{tpu_custom_call.1} parent=83 // pred_fallthru
          _
        // Predicated region
        $region89: #{tpu_custom_call.1} parent=83 // pred_check
          %p1020 = pneg %p226
        $region90: #{tpu_custom_call.1} parent=83 // pred_check_branch
          %1022 = sbr.rel (%p1020) target = $region92
        $region91: #{tpu_custom_call.1} parent=83 // pred_region
          %s1023 = sand.u32 %s31, 1
          %s1024 = scalar_lea.sflag [#allocation14], %s1023
          %s1025 = sand.u32 %s211, 1
          %s1026 = smul.addr %s1025, 8
          %s1027 = scalar_lea.vmem [#allocation15], %s1026
          %1028 = dma.done %s1024, 128
        $region92: #{tpu_custom_call.1} parent=83 // pred_fallthru
          _
      $region84: #{tpu_custom_call.1} parent=5 // pred_fallthru
        _
    $region6: #{tpu_custom_call.1} parent=1 // loop_footer
      %s29 = sadd.s32 1, %s25
    $region7: #{tpu_custom_call.1} parent=1 // loop_footer_branch
      %24 = sbr.rel target = $region3
    $region8: #{tpu_custom_call.1} parent=1 // loop_exit
      _
    %1029 = vsyncpa [#allocation4], 1
    %s1030 = scalar_lea.sflag [#allocation4], 1
    %1031 = vsyncpa %s1030, 1
    %1032 = vsyncpa [#allocation7], 1
    %s1033 = scalar_lea.sflag [#allocation7], 1
    %1034 = vsyncpa %s1033, 1
    %1035 = vsyncpa [#allocation10], 1
    %s1036 = scalar_lea.sflag [#allocation10], 1
    %1037 = vsyncpa %s1036, 1
    %1038 = vsyncpa [#allocation5], 1
    %s1039 = scalar_lea.sflag [#allocation5], 1
    %1040 = vsyncpa %s1039, 1
    %1041 = vsyncpa [#allocation14], 1
    %s1042 = scalar_lea.sflag [#allocation14], 1
    %1043 = vsyncpa %s1042, 1

</llo_original>
